<compile_context>
chip_gen: v5e
topology: v5e:2x2
jax: 0.10.0
libtpu: 0.0.40
codegen_flags: <defaults>
</compile_context>

<pallas_src>
import functools

import jax
import jax.numpy as jnp
from jax.experimental import pallas as pl
from jax.experimental.pallas import tpu as pltpu


def _round_up(x: int, m: int) -> int:
    return ((x + m - 1) // m) * m


# --------------------------------------------------------------------------
# Kernel: fused fc1 -> relu -> fc2 -> relu -> fc3 -> tanh on one batch tile.
# --------------------------------------------------------------------------
def actor_kernel(state_ref, w1_ref, b1_ref, w2_ref, b2_ref, w3_ref, b3_ref,
                 out_ref):
    # Cast state to the MXU operand dtype in-kernel (state stays f32 in HBM).
    x = state_ref[...].astype(w1_ref.dtype)
    # Layer 1: (TB, S) @ (S, H1p) + (1, H1p) -> relu   (f32 accumulation)
    h1 = jnp.dot(x, w1_ref[...],
                 preferred_element_type=jnp.float32) + b1_ref[...]
    h1 = jnp.maximum(h1, 0.0)
    # Layer 2: (TB, H1p) @ (H1p, H2p) + (1, H2p) -> relu
    h2 = jnp.dot(h1.astype(w2_ref.dtype), w2_ref[...],
                 preferred_element_type=jnp.float32) + b2_ref[...]
    h2 = jnp.maximum(h2, 0.0)
    # Layer 3: (TB, H2p) @ (H2p, A) + (1, A) -> tanh (EUP)
    h3 = jnp.dot(h2.astype(w3_ref.dtype), w3_ref[...],
                 preferred_element_type=jnp.float32) + b3_ref[...]
    out_ref[...] = jnp.tanh(h3).astype(out_ref.dtype)


# --------------------------------------------------------------------------
# One-time parameter preparation (pad hidden dims to 128, cast MXU operands).
# Do NOT call this inside the per-step forward path.
# --------------------------------------------------------------------------
def prepare_actor_params(params, compute_dtype=jnp.bfloat16):
    """Pad hidden dims to multiples of 128 and cast weights to compute_dtype.

    Input/output feature dims (state_dim, action_dim) stay native.  Biases
    stay f32 (the elementwise path in the kernel is f32 on all generations).
    Zero padding is exact through relu, so results match the unpadded net.
    """
    w1, b1 = params["w1"], params["b1"]
    w2, b2 = params["w2"], params["b2"]
    w3, b3 = params["w3"], params["b3"]

    S, H1 = w1.shape
    H2, A = w3.shape
    H1p = _round_up(H1, 128)
    H2p = _round_up(H2, 128)

    def pad2(x, rows, cols, dtype):
        return jnp.pad(x, ((0, rows - x.shape[0]),
                           (0, cols - x.shape[1]))).astype(dtype)

    return {
        "w1": pad2(w1, S, H1p, compute_dtype),
        "b1": pad2(b1, 1, H1p, jnp.float32),
        "w2": pad2(w2, H1p, H2p, compute_dtype),
        "b2": pad2(b2, 1, H2p, jnp.float32),
        "w3": pad2(w3, H2p, A, compute_dtype),
        "b3": b3.astype(jnp.float32),
    }


# --------------------------------------------------------------------------
# Forward wrapper.
# --------------------------------------------------------------------------
@functools.partial(jax.jit, static_argnames=("block_b",))
def actor_forward(state, prepared, *, block_b=1024):
    """state: (B, state_dim) f32; prepared: output of prepare_actor_params.

    Returns (B, action_dim) f32.
    """
    w1, b1 = prepared["w1"], prepared["b1"]
    w2, b2 = prepared["w2"], prepared["b2"]
    w3, b3 = prepared["w3"], prepared["b3"]

    B, S = state.shape
    A = w3.shape[1]

    # Batch tile: multiple of 8 sublanes.  Large tiles amortize the ~0.35 us
    # per-grid-step overhead; but when the batch is big enough, keep >= 4 grid
    # steps so the pipeline double-buffers and v7x's two TCs each get >= 2.
    tb_cap = max(_round_up(block_b, 8), 8)
    if B <= tb_cap:
        TB = _round_up(B, 8)
    else:
        TB = max(8, min(tb_cap, _round_up(pl.cdiv(B, 4), 8)))
    Bp = _round_up(B, TB)
    nb = Bp // TB

    state_p = state if Bp == B else jnp.pad(state, ((0, Bp - B), (0, 0)))

    # Streamed blocks (native feature width; last dim == full array dim is a
    # legal block shape).  Weights/biases use constant index maps and stay
    # resident in VMEM across all grid steps.
    stream = lambda rows, cols: pl.BlockSpec((rows, cols), lambda i: (i, 0))
    resident = lambda arr: pl.BlockSpec(arr.shape, lambda i: (0, 0))

    grid_spec = pltpu.PrefetchScalarGridSpec(
        num_scalar_prefetch=0,
        grid=(nb,),
        in_specs=[
            stream(TB, S),          # state streams over the batch grid
            resident(w1), resident(b1),
            resident(w2), resident(b2),
            resident(w3), resident(b3),
        ],
        out_specs=stream(TB, A),    # native-width output (no padded columns)
    )

    out_p = pl.pallas_call(
        actor_kernel,
        out_shape=jax.ShapeDtypeStruct((Bp, A), jnp.float32),
        grid_spec=grid_spec,
        compiler_params=pltpu.CompilerParams(
            # Batch grid steps are independent -> shard across TCs on v7x.
            dimension_semantics=("parallel",),
        ),
    )(state_p, w1, b1, w2, b2, w3, b3)

    return out_p if Bp == B else out_p[:B]


# --------------------------------------------------------------------------
# Synthetic params + pure-JAX reference.
# --------------------------------------------------------------------------
def init_actor_params(key, state_dim, action_dim, hid_sizes=(256, 256)):
    """Deterministic synthetic params. Weights stored as (in, out)."""
    h1, h2 = hid_sizes
    ks = jax.random.split(key, 6)

    def lin(kw, kb, fan_in, fan_out):
        bound = 1.0 / jnp.sqrt(fan_in)
        w = jax.random.uniform(kw, (fan_in, fan_out), jnp.float32, -bound, bound)
        b = jax.random.uniform(kb, (1, fan_out), jnp.float32, -bound, bound)
        return w, b

    w1, b1 = lin(ks[0], ks[1], state_dim, h1)
    w2, b2 = lin(ks[2], ks[3], h1, h2)
    w3, b3 = lin(ks[4], ks[5], h2, action_dim)
    return {"w1": w1, "b1": b1, "w2": w2, "b2": b2, "w3": w3, "b3": b3}


def actor_reference(state, params):
    x = jnp.maximum(state @ params["w1"] + params["b1"], 0.0)
    x = jnp.maximum(x @ params["w2"] + params["b2"], 0.0)
    return jnp.tanh(x @ params["w3"] + params["b3"])


if __name__ == "__main__":
    key = jax.random.PRNGKey(0)
    k_state, k_params, k_big = jax.random.split(key, 3)

    batch, state_dim, action_dim = 8, 16, 8
    hid_sizes = (32, 32)

    state = jax.random.normal(k_state, (batch, state_dim), dtype=jnp.float32)
    params = init_actor_params(k_params, state_dim, action_dim, hid_sizes)

    # Exact f32 path: pre-pad params once, then tiny-batch forward (grid = 1).
    prep_f32 = prepare_actor_params(params, compute_dtype=jnp.float32)
    out = jax.block_until_ready(actor_forward(state, prep_f32))
    ref = actor_reference(state, params)
    assert out.shape == (batch, action_dim)
    assert jnp.allclose(out, ref, atol=1e-5, rtol=1e-5)

    # Larger RL batch: exercises the multi-step parallel batch grid (>=4 steps)
    # and the default bf16-weight MXU path (state is cast to bf16 in-kernel as
    # the MXU operand; elementwise work stays f32).
    big_state = jax.random.normal(k_big, (256, state_dim), dtype=jnp.float32)
    prep_bf16 = prepare_actor_params(params, compute_dtype=jnp.bfloat16)
    out_big = jax.block_until_ready(actor_forward(big_state, prep_bf16))
    ref_big = actor_reference(big_state, params)
    assert out_big.shape == (256, action_dim)
    assert jnp.allclose(out_big, ref_big, atol=5e-2, rtol=0.0)

    print("KERNEL_OK")
</pallas_src>

<mosaic_0001>
module attributes {stable_mosaic.version = 11 : i64} {
  func.func @actor_kernel(%arg0: i32, %arg1: memref<8x16xf32, #tpu.memory_space<vmem>>, %arg2: memref<16x128xf32, #tpu.memory_space<vmem>>, %arg3: memref<1x128xf32, #tpu.memory_space<vmem>>, %arg4: memref<128x128xf32, #tpu.memory_space<vmem>>, %arg5: memref<1x128xf32, #tpu.memory_space<vmem>>, %arg6: memref<128x8xf32, #tpu.memory_space<vmem>>, %arg7: memref<1x8xf32, #tpu.memory_space<vmem>>, %arg8: memref<8x8xf32, #tpu.memory_space<vmem>>) attributes {dimension_semantics = [#tpu.dimension_semantics<parallel>], iteration_bounds = array<i64: 1>, scalar_prefetch = 0 : i64, scratch_operands = 0 : i64, tpu.core_type = #tpu.core_type<tc>, window_params = [{transform_indices = @transform_0, window_bounds = array<i64: 8, 16>}, {pipeline_mode = #tpu.pipeline_mode<synchronous>, transform_indices = @transform_1, window_bounds = array<i64: 16, 128>}, {pipeline_mode = #tpu.pipeline_mode<synchronous>, transform_indices = @transform_2, window_bounds = array<i64: 1, 128>}, {pipeline_mode = #tpu.pipeline_mode<synchronous>, transform_indices = @transform_3, window_bounds = array<i64: 128, 128>}, {pipeline_mode = #tpu.pipeline_mode<synchronous>, transform_indices = @transform_4, window_bounds = array<i64: 1, 128>}, {pipeline_mode = #tpu.pipeline_mode<synchronous>, transform_indices = @transform_5, window_bounds = array<i64: 128, 8>}, {pipeline_mode = #tpu.pipeline_mode<synchronous>, transform_indices = @transform_6, window_bounds = array<i64: 1, 8>}, {transform_indices = @transform_7, window_bounds = array<i64: 8, 8>}]} {
    %c0 = arith.constant 0 : index
    %c0_0 = arith.constant 0 : index
    %0 = vector.load %arg1[%c0, %c0_0] : memref<8x16xf32, #tpu.memory_space<vmem>>, vector<8x16xf32>
    %c0_1 = arith.constant 0 : index
    %c0_2 = arith.constant 0 : index
    %1 = vector.load %arg2[%c0_1, %c0_2] : memref<16x128xf32, #tpu.memory_space<vmem>>, vector<16x128xf32>
    %cst = arith.constant dense<0.000000e+00> : vector<8x128xf32>
    %2 = tpu.matmul %0, %1, %cst {dimension_numbers = #tpu.dot_dimension_numbers<[1], [0], [0], [1], [0, 0, 1, 1], [], []>} : vector<8x16xf32>, vector<16x128xf32>, vector<8x128xf32> -> vector<8x128xf32>
    %c0_3 = arith.constant 0 : index
    %c0_4 = arith.constant 0 : index
    %3 = vector.load %arg3[%c0_3, %c0_4] : memref<1x128xf32, #tpu.memory_space<vmem>>, vector<1x128xf32>
    %4 = vector.broadcast %3 : vector<1x128xf32> to vector<8x128xf32>
    %5 = arith.addf %2, %4 : vector<8x128xf32>
    %cst_5 = arith.constant 0.000000e+00 : f32
    %6 = vector.broadcast %cst_5 : f32 to vector<8x128xf32>
    %7 = arith.maximumf %5, %6 : vector<8x128xf32>
    %c0_6 = arith.constant 0 : index
    %c0_7 = arith.constant 0 : index
    %8 = vector.load %arg4[%c0_6, %c0_7] : memref<128x128xf32, #tpu.memory_space<vmem>>, vector<128x128xf32>
    %cst_8 = arith.constant dense<0.000000e+00> : vector<8x128xf32>
    %9 = tpu.matmul %7, %8, %cst_8 {dimension_numbers = #tpu.dot_dimension_numbers<[1], [0], [0], [1], [0, 0, 1, 1], [], []>} : vector<8x128xf32>, vector<128x128xf32>, vector<8x128xf32> -> vector<8x128xf32>
    %c0_9 = arith.constant 0 : index
    %c0_10 = arith.constant 0 : index
    %10 = vector.load %arg5[%c0_9, %c0_10] : memref<1x128xf32, #tpu.memory_space<vmem>>, vector<1x128xf32>
    %11 = vector.broadcast %10 : vector<1x128xf32> to vector<8x128xf32>
    %12 = arith.addf %9, %11 : vector<8x128xf32>
    %cst_11 = arith.constant 0.000000e+00 : f32
    %13 = vector.broadcast %cst_11 : f32 to vector<8x128xf32>
    %14 = arith.maximumf %12, %13 : vector<8x128xf32>
    %c0_12 = arith.constant 0 : index
    %c0_13 = arith.constant 0 : index
    %15 = vector.load %arg6[%c0_12, %c0_13] : memref<128x8xf32, #tpu.memory_space<vmem>>, vector<128x8xf32>
    %cst_14 = arith.constant dense<0.000000e+00> : vector<8x8xf32>
    %16 = tpu.matmul %14, %15, %cst_14 {dimension_numbers = #tpu.dot_dimension_numbers<[1], [0], [0], [1], [0, 0, 1, 1], [], []>} : vector<8x128xf32>, vector<128x8xf32>, vector<8x8xf32> -> vector<8x8xf32>
    %c0_15 = arith.constant 0 : index
    %c0_16 = arith.constant 0 : index
    %17 = vector.load %arg7[%c0_15, %c0_16] : memref<1x8xf32, #tpu.memory_space<vmem>>, vector<1x8xf32>
    %18 = vector.broadcast %17 : vector<1x8xf32> to vector<8x8xf32>
    %19 = arith.addf %16, %18 : vector<8x8xf32>
    %20 = math.tanh %19 : vector<8x8xf32>
    %c0_17 = arith.constant 0 : index
    %c0_18 = arith.constant 0 : index
    %21 = vector.load %arg8[%c0_17, %c0_18] : memref<8x8xf32, #tpu.memory_space<vmem>>, vector<8x8xf32>
    tpu.vector_store %arg8[%c0_17, %c0_18], %20 {strides = array<i32>} : memref<8x8xf32, #tpu.memory_space<vmem>>, vector<8x8xf32>,
    return
  }
  func.func @transform_0(%arg0: i32) -> (i32, i32) {
    %c0_i32 = arith.constant 0 : i32
    %c0_i32_0 = arith.constant 0 : i32
    return %arg0, %c0_i32 : i32, i32
  }
  func.func @transform_1(%arg0: i32) -> (i32, i32) {
    %c0_i32 = arith.constant 0 : i32
    %c0_i32_0 = arith.constant 0 : i32
    %c0_i32_1 = arith.constant 0 : i32
    return %c0_i32, %c0_i32_0 : i32, i32
  }
  func.func @transform_2(%arg0: i32) -> (i32, i32) {
    %c0_i32 = arith.constant 0 : i32
    %c0_i32_0 = arith.constant 0 : i32
    %c0_i32_1 = arith.constant 0 : i32
    return %c0_i32, %c0_i32_0 : i32, i32
  }
  func.func @transform_3(%arg0: i32) -> (i32, i32) {
    %c0_i32 = arith.constant 0 : i32
    %c0_i32_0 = arith.constant 0 : i32
    %c0_i32_1 = arith.constant 0 : i32
    return %c0_i32, %c0_i32_0 : i32, i32
  }
  func.func @transform_4(%arg0: i32) -> (i32, i32) {
    %c0_i32 = arith.constant 0 : i32
    %c0_i32_0 = arith.constant 0 : i32
    %c0_i32_1 = arith.constant 0 : i32
    return %c0_i32, %c0_i32_0 : i32, i32
  }
  func.func @transform_5(%arg0: i32) -> (i32, i32) {
    %c0_i32 = arith.constant 0 : i32
    %c0_i32_0 = arith.constant 0 : i32
    %c0_i32_1 = arith.constant 0 : i32
    return %c0_i32, %c0_i32_0 : i32, i32
  }
  func.func @transform_6(%arg0: i32) -> (i32, i32) {
    %c0_i32 = arith.constant 0 : i32
    %c0_i32_0 = arith.constant 0 : i32
    %c0_i32_1 = arith.constant 0 : i32
    return %c0_i32, %c0_i32_0 : i32, i32
  }
  func.func @transform_7(%arg0: i32) -> (i32, i32) {
    %c0_i32 = arith.constant 0 : i32
    %c0_i32_0 = arith.constant 0 : i32
    return %arg0, %c0_i32 : i32, i32
  }
}

</mosaic_0001>

<llo_original>
// kernel: actor_forward.1
$region0: #{actor_forward.1}
  #allocation0 [shape = 'u32[]', space=smem, size = 0x4, offset = 0x4, fixed_abs, tag = 'smem constant byte address 0x4 - core index']
  #allocation1 [shape = 'u32[72,128]{1,0:T(1,128)}', space=vmem, size = 0x9000, scoped, tag = 'internal scratch']
  %s0 = inlined_call_operand.vmem [shape: f32[8,16], index: 0, kind: input, shape index: {}]
  %s1 = inlined_call_operand.hbm [shape: f32[16,128], index: 1, kind: input, shape index: {}]
  %s2 = inlined_call_operand.vmem [shape: f32[1,128], index: 2, kind: input, shape index: {}]
  %s3 = inlined_call_operand.vmem [shape: f32[128,128], index: 3, kind: input, shape index: {}]
  %s4 = inlined_call_operand.vmem [shape: f32[1,128], index: 4, kind: input, shape index: {}]
  %s5 = inlined_call_operand.vmem [shape: f32[128,8], index: 5, kind: input, shape index: {}]
  %s6 = inlined_call_operand.vmem [shape: f32[1,8], index: 6, kind: input, shape index: {}]
  %s7 = inlined_call_operand.hbm [shape: f32[8,8], index: 7, kind: output, shape index: {}]
  %s8 = sld [smem:[#allocation0]]
  $region42: #{actor_forward.1} parent=0
    _
  %s10 = ssub.s32 1, %s8
  %s11 = scalar_select 0, %s10, %s8
  $region1: #{actor_forward.1} parent=0
    #allocation2 [shape = 'u8[8192]{0}', space=vmem, size = 0x2000, scoped, tag = 'input window, operand 1, single buffered']
    #allocation3 [shape = 's32[1]{0}', space=sflag, size = 0x4, scoped, tag = 'scoped memory for actor_forward.1']
    #allocation4 [shape = 's32[1]{0}', space=sflag, size = 0x4, scoped, tag = 'scoped memory for actor_forward.1']
    #allocation5 [shape = 'u8[4096]{0}', space=vmem, size = 0x1000, scoped, tag = 'output window, operand 0, single buffered']
    %12 = vsyncpa [#allocation3], 0
    %13 = vsyncpa [#allocation4], 0
    // Predicated region
    $region2: #{actor_forward.1} parent=1 // pred_check
      _
    $region3: #{actor_forward.1} parent=1 // pred_check_branch
      %15 = sbr.rel (0) target = $region5
    $region4: #{actor_forward.1} parent=1 // pred_region
      _
    $region5: #{actor_forward.1} parent=1 // pred_fallthru
      _
    // Predicated region
    $region6: #{actor_forward.1} parent=1 // pred_check
      _
    $region7: #{actor_forward.1} parent=1 // pred_check_branch
      %17 = sbr.rel (0) target = $region9
    $region8: #{actor_forward.1} parent=1 // pred_region
      %19 = vsyncadd [#allocation3], 0
      %s20 = sshll.u32 %s1, 4
      %s21 = int_to_ptr.hbm [resolvable:$true] %s20
      %s22 = sshll.u32 [#allocation2], 4
      %s23 = int_to_ptr.vmem [resolvable:$true] %s22
      %28 = dma.hbm_to_vmem [thread:$0]  %s21, 256, %s23, [#allocation3], 128, 128, 8
    $region9: #{actor_forward.1} parent=1 // pred_fallthru
      _
    // Predicated region
    $region10: #{actor_forward.1} parent=1 // pred_check
      _
    $region11: #{actor_forward.1} parent=1 // pred_check_branch
      %30 = sbr.rel (0) target = $region13
    $region12: #{actor_forward.1} parent=1 // pred_region
      _
    $region13: #{actor_forward.1} parent=1 // pred_fallthru
      _
    // Predicated region
    $region14: #{actor_forward.1} parent=1 // pred_check
      _
    $region15: #{actor_forward.1} parent=1 // pred_check_branch
      %32 = sbr.rel (0) target = $region17
    $region16: #{actor_forward.1} parent=1 // pred_region
      _
    $region17: #{actor_forward.1} parent=1 // pred_fallthru
      _
    // Predicated region
    $region18: #{actor_forward.1} parent=1 // pred_check
      _
    $region19: #{actor_forward.1} parent=1 // pred_check_branch
      %34 = sbr.rel (0) target = $region21
    $region20: #{actor_forward.1} parent=1 // pred_region
      _
    $region21: #{actor_forward.1} parent=1 // pred_fallthru
      _
    // Predicated region
    $region22: #{actor_forward.1} parent=1 // pred_check
      _
    $region23: #{actor_forward.1} parent=1 // pred_check_branch
      %36 = sbr.rel (0) target = $region25
    $region24: #{actor_forward.1} parent=1 // pred_region
      _
    $region25: #{actor_forward.1} parent=1 // pred_fallthru
      _
    // Predicated region
    $region26: #{actor_forward.1} parent=1 // pred_check
      _
    $region27: #{actor_forward.1} parent=1 // pred_check_branch
      %38 = sbr.rel (0) target = $region29
    $region28: #{actor_forward.1} parent=1 // pred_region
      _
    $region29: #{actor_forward.1} parent=1 // pred_fallthru
      _
    // Predicated region
    $region30: #{actor_forward.1} parent=1 // pred_check
      _
    $region31: #{actor_forward.1} parent=1 // pred_check_branch
      %40 = sbr.rel (0) target = $region33
    $region32: #{actor_forward.1} parent=1 // pred_region
      %42 = dma.done [#allocation3], 256
    $region33: #{actor_forward.1} parent=1 // pred_fallthru
      _
    %v43 = vld [vmem:[%s0] sm:$0xff]
    %v44 = vld [vmem:[#allocation2] sm:$0xff]
    %v45 = vld [vmem:[#allocation2 + $0x8] sm:$0xff]
    %v46 = vld [vmem:[%s2] sm:$0x1]
    %v48 = vperm.slane %v46, 0
    %vm50 = vcmask 130048
    %v52 = vsel %vm50, %v43, 0
    %54 = vmatpush.msra.mxu0 0.0
    %55 = vmatpush.msra.mxu0 0.0
    %56 = vmatpush.msra.mxu0 0.0
    %57 = vmatpush.msra.mxu0 0.0
    %58 = vmatpush.msra.mxu0 0.0
    %59 = vmatpush.msra.mxu0 0.0
    %60 = vmatpush.msra.mxu0 0.0
    %61 = vmatpush.msra.mxu0 0.0
    %62 = vmatpush.msra.mxu0 0.0
    %63 = vmatpush.msra.mxu0 0.0
    %64 = vmatpush.msra.mxu0 0.0
    %65 = vmatpush.msra.mxu0 0.0
    %66 = vmatpush.msra.mxu0 0.0
    %67 = vmatpush.msra.mxu0 0.0
    %68 = vmatpush.msra.mxu0 %v45
    %69 = vmatpush.msra.mxu0 %v44
    %70 = vmatmul.f32.gmra.mxu0 %v52
    %v71 = vpop.f32.mrf.mxu0
    %v72 = vadd.f32 %v48, %v71
    %73 = vdwg.mxu0
    %v74 = vmax.f32 %v72, 0.0
    %v75 = vld [vmem:[%s3] sm:$0xff]
    %v76 = vld [vmem:[%s3 + $0x8] sm:$0xff]
    %v77 = vld [vmem:[%s3 + $0x10] sm:$0xff]
    %v78 = vld [vmem:[%s3 + $0x18] sm:$0xff]
    %v79 = vld [vmem:[%s3 + $0x20] sm:$0xff]
    %v80 = vld [vmem:[%s3 + $0x28] sm:$0xff]
    %v81 = vld [vmem:[%s3 + $0x30] sm:$0xff]
    %v82 = vld [vmem:[%s3 + $0x38] sm:$0xff]
    %v83 = vld [vmem:[%s3 + $0x40] sm:$0xff]
    %v84 = vld [vmem:[%s3 + $0x48] sm:$0xff]
    %v85 = vld [vmem:[%s3 + $0x50] sm:$0xff]
    %v86 = vld [vmem:[%s3 + $0x58] sm:$0xff]
    %v87 = vld [vmem:[%s3 + $0x60] sm:$0xff]
    %v88 = vld [vmem:[%s3 + $0x68] sm:$0xff]
    %v89 = vld [vmem:[%s3 + $0x70] sm:$0xff]
    %v90 = vld [vmem:[%s3 + $0x78] sm:$0xff]
    %v91 = vld [vmem:[%s4] sm:$0x1]
    %v93 = vperm.slane %v91, 0
    %95 = vmatpush.msra.mxu0 %v90
    %96 = vmatpush.msra.mxu0 %v89
    %97 = vmatpush.msra.mxu0 %v88
    %98 = vmatpush.msra.mxu0 %v87
    %99 = vmatpush.msra.mxu0 %v86
    %100 = vmatpush.msra.mxu0 %v85
    %101 = vmatpush.msra.mxu0 %v84
    %102 = vmatpush.msra.mxu0 %v83
    %103 = vmatpush.msra.mxu0 %v82
    %104 = vmatpush.msra.mxu0 %v81
    %105 = vmatpush.msra.mxu0 %v80
    %106 = vmatpush.msra.mxu0 %v79
    %107 = vmatpush.msra.mxu0 %v78
    %108 = vmatpush.msra.mxu0 %v77
    %109 = vmatpush.msra.mxu0 %v76
    %110 = vmatpush.msra.mxu0 %v75
    %111 = vmatmul.f32.gmra.mxu0 %v74
    %v112 = vpop.f32.mrf.mxu0
    %v113 = vadd.f32 %v93, %v112
    %114 = vdwg.mxu0
    %v115 = vmax.f32 %v113, 0.0
    %v116 = vld [vmem:[%s5] sm:$0xff]
    %v117 = vld [vmem:[%s5 + $0x8] sm:$0xff]
    %v118 = vld [vmem:[%s5 + $0x10] sm:$0xff]
    %v119 = vld [vmem:[%s5 + $0x18] sm:$0xff]
    %v120 = vld [vmem:[%s5 + $0x20] sm:$0xff]
    %v121 = vld [vmem:[%s5 + $0x28] sm:$0xff]
    %v122 = vld [vmem:[%s5 + $0x30] sm:$0xff]
    %v123 = vld [vmem:[%s5 + $0x38] sm:$0xff]
    %v124 = vld [vmem:[%s5 + $0x40] sm:$0xff]
    %v125 = vld [vmem:[%s5 + $0x48] sm:$0xff]
    %v126 = vld [vmem:[%s5 + $0x50] sm:$0xff]
    %v127 = vld [vmem:[%s5 + $0x58] sm:$0xff]
    %v128 = vld [vmem:[%s5 + $0x60] sm:$0xff]
    %v129 = vld [vmem:[%s5 + $0x68] sm:$0xff]
    %v130 = vld [vmem:[%s5 + $0x70] sm:$0xff]
    %v131 = vld [vmem:[%s5 + $0x78] sm:$0xff]
    %v132 = vld [vmem:[%s6] sm:$0x1]
    %v134 = vperm.slane %v132, 0
    %136 = vmatpush.msra.mxu0 %v131
    %137 = vmatpush.msra.mxu0 %v130
    %138 = vmatpush.msra.mxu0 %v129
    %139 = vmatpush.msra.mxu0 %v128
    %140 = vmatpush.msra.mxu0 %v127
    %141 = vmatpush.msra.mxu0 %v126
    %142 = vmatpush.msra.mxu0 %v125
    %143 = vmatpush.msra.mxu0 %v124
    %144 = vmatpush.msra.mxu0 %v123
    %145 = vmatpush.msra.mxu0 %v122
    %146 = vmatpush.msra.mxu0 %v121
    %147 = vmatpush.msra.mxu0 %v120
    %148 = vmatpush.msra.mxu0 %v119
    %149 = vmatpush.msra.mxu0 %v118
    %150 = vmatpush.msra.mxu0 %v117
    %151 = vmatpush.msra.mxu0 %v116
    %152 = vmatmul.f32.gmra.mxu0 %v115
    %v153 = vpop.f32.mrf.mxu0
    %v154 = vadd.f32 %v134, %v153
    %155 = vdwg.mxu0
    %v156 = vtanh.pop %v154
    %vm157 = vcmask 64512
    %158 = vst.msk [vmem:[#allocation5] sm:$0xff] %vm157, %v156
    // Predicated region
    $region34: #{actor_forward.1} parent=1 // pred_check
      _
    $region35: #{actor_forward.1} parent=1 // pred_check_branch
      %160 = sbr.rel (0) target = $region37
    $region36: #{actor_forward.1} parent=1 // pred_region
      %162 = vsyncadd [#allocation4], 0
      %s164 = sshll.u32 [#allocation5], 4
      %s165 = int_to_ptr.vmem [resolvable:$true] %s164
      %s166 = sshll.u32 %s7, 4
      %s167 = int_to_ptr.hbm [resolvable:$true] %s166
      %169 = dma.vmem_to_hbm [thread:$0]  %s165, 128, %s167, [#allocation4]
    $region37: #{actor_forward.1} parent=1 // pred_fallthru
      _
    // Predicated region
    $region38: #{actor_forward.1} parent=1 // pred_check
      _
    $region39: #{actor_forward.1} parent=1 // pred_check_branch
      %171 = sbr.rel (0) target = $region41
    $region40: #{actor_forward.1} parent=1 // pred_region
      %173 = dma.done [#allocation4], 128
    $region41: #{actor_forward.1} parent=1 // pred_fallthru
      _
    %174 = vsyncpa [#allocation3], 1
    %175 = vsyncpa [#allocation4], 1

</llo_original>
